<compile_context>
chip_gen: v6e
topology: v6e:2x2x1
jax: 0.10.0
libtpu: 0.0.40
codegen_flags: <defaults>
</compile_context>

<pallas_src>
import functools
import math

import jax
import jax.numpy as jnp
from jax import lax
from jax.experimental import pallas as pl
from jax.experimental.pallas import tpu as pltpu

BN_EPS = 1e-5
_VMEM_LIMIT_BYTES = 48 * 1024 * 1024   # fits v7x's 64 MiB/TC physical VMEM
MAX_RESIDENT_ROWS = 2048               # dispatch to the parallel tiled path earlier (v7x)
DEFAULT_TILE = 2048                    # rows per grid step in the tiled path
_TILE_QUANTUM = 128                    # tile multiple (bf16 packing + lane alignment)


def _round_up(n, m):
    return ((n + m - 1) // m) * m


def _dot(a, b, precision):
    """MXU matmul with f32 accumulation."""
    return jnp.dot(a, b, preferred_element_type=jnp.float32, precision=precision)


def _bn_train(h, gamma, beta):
    """PyTorch BatchNorm1d training-mode: batch mean, biased batch var.

    Affine folded into a single (1,F) scale row -> one full-tensor multiply.
    """
    mu = jnp.mean(h, axis=0, keepdims=True)
    diff = h - mu
    var = jnp.mean(diff * diff, axis=0, keepdims=True)
    scale = gamma * lax.rsqrt(var + BN_EPS)
    return diff * scale + beta


# --------------------------------------------------------------------------
# Path A: whole batch VMEM-resident (exact BN, single kernel).
# --------------------------------------------------------------------------
def _oec_resident_kernel(x_ref, w1_ref, w2_ref, vecs_ref, o_ref, *, precision):
    vecs = vecs_ref[...]                  # (8, Fp) f32: all small params, one DMA
    b1, g1, be1 = vecs[0:1], vecs[1:2], vecs[2:3]
    b2, g2, be2 = vecs[3:4], vecs[4:5], vecs[5:6]
    w3_row = vecs[6:7]                    # (1, Fp)
    b3 = vecs[7:8, 0:1]                   # (1, 1)

    # Layer 1: Linear + ReLU + BN (f32 epilogue)
    h = _dot(x_ref[...].astype(w1_ref.dtype), w1_ref[...], precision) + b1
    h = jnp.maximum(h, 0.0)
    h = _bn_train(h, g1, be1)

    # Layer 2: Linear + ReLU + BN
    h = _dot(h.astype(w2_ref.dtype), w2_ref[...], precision) + b2
    h = jnp.maximum(h, 0.0)
    h = _bn_train(h, g2, be2)

    # Layer 3: Linear(F->1) as VPU multiply + XLU lane reduction (no MXU pass).
    o_ref[...] = jnp.sum(h * w3_row, axis=-1, keepdims=True) + b3


def _forward_resident(x, p, precision):
    B = x.shape[0]
    Fp = p["w1"].shape[1]
    vecs = _pack_small_params(p, Fp)
    vmem = pl.BlockSpec(memory_space=pltpu.MemorySpace.VMEM)
    out = pl.pallas_call(
        functools.partial(_oec_resident_kernel, precision=precision),
        out_shape=jax.ShapeDtypeStruct((B, 1), jnp.float32),
        in_specs=[vmem, vmem, vmem, vmem],
        out_specs=vmem,
        compiler_params=pltpu.CompilerParams(vmem_limit_bytes=_VMEM_LIMIT_BYTES),
    )(x, p["w1"], p["w2"], vecs)
    return out.reshape(B)     # .squeeze(): metadata-only reshape


# --------------------------------------------------------------------------
# Path B: batch-tiled, pipelined, 3-pass variant.  BN stays exact: each pass
# emits per-tile partial sum/sumsq, reduced between passes; BN is folded into
# the following Linear so passes are plain matmul(+ReLU)(+stats).
# --------------------------------------------------------------------------
def _k_lin_relu_stats(x_ref, w_ref, b_ref, a_ref, st_ref, *, batch, tile, precision):
    a = _dot(x_ref[...].astype(w_ref.dtype), w_ref[...], precision)
    a = jnp.maximum(a + b_ref[...], 0.0)                         # f32 (tile, Fp)
    a_ref[...] = a.astype(a_ref.dtype)                           # bf16 store by default
    # mask padded batch rows out of the BN statistics
    row = pl.program_id(0) * tile + lax.broadcasted_iota(jnp.int32, (tile, 1), 0)
    am = jnp.where(row < batch, a, 0.0)
    st_ref[:, 0:1, :] = jnp.sum(am, axis=0, keepdims=True)[None]        # sum
    st_ref[:, 1:2, :] = jnp.sum(am * am, axis=0, keepdims=True)[None]   # sumsq


def _k_lin2_stats(a_ref, w_ref, b_ref, st_ref, *, batch, tile, precision):
    # BN1 already folded into (w, b); stats only -- no a2 writeback to HBM.
    a = _dot(a_ref[...].astype(w_ref.dtype), w_ref[...], precision)
    a = jnp.maximum(a + b_ref[...], 0.0)
    row = pl.program_id(0) * tile + lax.broadcasted_iota(jnp.int32, (tile, 1), 0)
    am = jnp.where(row < batch, a, 0.0)
    st_ref[:, 0:1, :] = jnp.sum(am, axis=0, keepdims=True)[None]
    st_ref[:, 1:2, :] = jnp.sum(am * am, axis=0, keepdims=True)[None]


def _k_lin2_out(a_ref, w_ref, rows_ref, z_ref, *, precision):
    # Recompute layer-2 (cheap, ~20 KFLOP/row) instead of round-tripping a2.
    rows = rows_ref[...]                  # (3, Fp): b2f, w3f, [b3f, 0...]
    b2f, w3f = rows[0:1], rows[1:2]
    b3f = rows[2:3, 0:1]
    a = _dot(a_ref[...].astype(w_ref.dtype), w_ref[...], precision)
    a = jnp.maximum(a + b2f, 0.0)
    # BN2 folded into w3f/b3f; final Linear(F->1) as VPU mult + lane reduce.
    z_ref[...] = jnp.sum(a * w3f, axis=-1, keepdims=True) + b3f


def _bn_fold_stats(st, batch, gamma):
    """Reduce per-tile (sum, sumsq) -> (mean, folded gamma*rsqrt(var+eps))."""
    n = jnp.float32(batch)
    mean = jnp.sum(st[:, 0, :], axis=0) / n                    # (Fp,)
    ex2 = jnp.sum(st[:, 1, :], axis=0) / n
    var = jnp.maximum(ex2 - mean * mean, 0.0)                  # biased batch var
    scale = gamma.reshape(-1) * lax.rsqrt(var + BN_EPS)
    return mean, scale


def _forward_tiled(x, p, precision, tile, interm_dtype):
    B, din = x.shape
    Fp = p["w1"].shape[1]
    nt = pl.cdiv(B, tile)
    bp = nt * tile
    if bp != B:
        x = jnp.pad(x, ((0, bp - B), (0, 0)))

    cparams = pltpu.CompilerParams(
        dimension_semantics=("parallel",), vmem_limit_bytes=_VMEM_LIMIT_BYTES)
    st_spec = pl.BlockSpec((1, 2, Fp), lambda i: (i, 0, 0))
    st_shape = jax.ShapeDtypeStruct((nt, 2, Fp), jnp.float32)

    b1 = p["b1"].astype(jnp.float32)

    # ---- pass 1: Linear1 + ReLU, a1 (bf16) + per-tile BN1 partial stats ----
    a1, st1 = pl.pallas_call(
        functools.partial(_k_lin_relu_stats, batch=B, tile=tile, precision=precision),
        grid=(nt,),
        in_specs=[pl.BlockSpec((tile, din), lambda i: (i, 0)),
                  pl.BlockSpec((din, Fp), lambda i: (0, 0)),
                  pl.BlockSpec((1, Fp), lambda i: (0, 0))],
        out_specs=[pl.BlockSpec((tile, Fp), lambda i: (i, 0)), st_spec],
        out_shape=[jax.ShapeDtypeStruct((bp, Fp), interm_dtype), st_shape],
        compiler_params=cparams,
    )(x, p["w1"], b1)

    # Fold BN1 into (w2, b2): h1_bn @ w2 + b2 == a1 @ w2f + b2f
    mean1, scale1 = _bn_fold_stats(st1, B, p["g1"].astype(jnp.float32))
    w2 = p["w2"].astype(jnp.float32)
    w2f = w2 * scale1[:, None]
    b2f = jnp.dot(p["beta1"].astype(jnp.float32) - (mean1 * scale1)[None, :], w2,
                  precision=lax.Precision.HIGHEST) + p["b2"].astype(jnp.float32)

    # ---- pass 2: Linear2' + ReLU, per-tile BN2 partial stats only ----
    st2 = pl.pallas_call(
        functools.partial(_k_lin2_stats, batch=B, tile=tile, precision=precision),
        grid=(nt,),
        in_specs=[pl.BlockSpec((tile, Fp), lambda i: (i, 0)),
                  pl.BlockSpec((Fp, Fp), lambda i: (0, 0)),
                  pl.BlockSpec((1, Fp), lambda i: (0, 0))],
        out_specs=st_spec,
        out_shape=st_shape,
        compiler_params=cparams,
    )(a1, w2f, b2f)

    # Fold BN2 into (w3, b3): h2_bn @ w3 + b3 == sum(a2 * w3f, -1) + b3f
    mean2, scale2 = _bn_fold_stats(st2, B, p["g2"].astype(jnp.float32))
    w3 = p["w3"].astype(jnp.float32).reshape(-1)                 # (Fp,)
    w3f = (w3 * scale2)[None, :]                                 # (1, Fp)
    b3f = jnp.sum((p["beta2"].astype(jnp.float32).reshape(-1) - mean2 * scale2) * w3) \
        + p["b3"].astype(jnp.float32).reshape(())
    rows3 = jnp.concatenate(
        [b2f, w3f, jnp.zeros((1, Fp), jnp.float32).at[0, 0].set(b3f)], axis=0)

    # ---- pass 3: recompute Linear2' + ReLU, apply BN2-folded Linear3 ----
    z = pl.pallas_call(
        functools.partial(_k_lin2_out, precision=precision),
        grid=(nt,),
        in_specs=[pl.BlockSpec((tile, Fp), lambda i: (i, 0)),
                  pl.BlockSpec((Fp, Fp), lambda i: (0, 0)),
                  pl.BlockSpec((3, Fp), lambda i: (0, 0))],
        out_specs=pl.BlockSpec((tile, 1), lambda i: (i, 0)),
        out_shape=jax.ShapeDtypeStruct((bp, 1), jnp.float32),
        compiler_params=cparams,
    )(a1, w2f, rows3)

    return z.reshape(bp)[:B]


# --------------------------------------------------------------------------
# Parameter handling / public forward
# --------------------------------------------------------------------------
def _pack_small_params(p, Fp):
    """Pack the 8 tiny per-feature params into a single (8, Fp) f32 array."""
    w3_row = p["w3"].reshape(1, Fp).astype(jnp.float32)
    b3_row = jnp.zeros((1, Fp), jnp.float32).at[0, 0].set(
        p["b3"].astype(jnp.float32).reshape(()))
    return jnp.concatenate(
        [p["b1"], p["g1"], p["beta1"], p["b2"], p["g2"], p["beta2"], w3_row, b3_row],
        axis=0).astype(jnp.float32)


def _pad_features(params):
    """Zero-pad the hidden feature dim to the next multiple of 128 (lane-dense).

    Padded gammas / w3 rows are zero, so padded lanes contribute exactly 0.
    """
    F = params["w1"].shape[1]
    Fp = _round_up(F, 128)
    pf = Fp - F
    p = dict(params)
    if pf:
        p["w1"] = jnp.pad(params["w1"], ((0, 0), (0, pf)))
        p["b1"] = jnp.pad(params["b1"], ((0, 0), (0, pf)))
        p["g1"] = jnp.pad(params["g1"], ((0, 0), (0, pf)))
        p["beta1"] = jnp.pad(params["beta1"], ((0, 0), (0, pf)))
        p["w2"] = jnp.pad(params["w2"], ((0, pf), (0, pf)))
        p["b2"] = jnp.pad(params["b2"], ((0, 0), (0, pf)))
        p["g2"] = jnp.pad(params["g2"], ((0, 0), (0, pf)))
        p["beta2"] = jnp.pad(params["beta2"], ((0, 0), (0, pf)))
        p["w3"] = jnp.pad(params["w3"], ((0, pf), (0, 0)))
    return p, F, Fp


def init_params(key, dims=(192, 100, 100, 1)):
    """Deterministic PyTorch-style init: U(-1/sqrt(fan_in), 1/sqrt(fan_in))."""
    params = {}
    for li in range(len(dims) - 1):
        fan_in, fan_out = dims[li], dims[li + 1]
        key, kw, kb = jax.random.split(key, 3)
        bound = 1.0 / math.sqrt(fan_in)
        params[f"w{li + 1}"] = jax.random.uniform(
            kw, (fan_in, fan_out), jnp.float32, -bound, bound)   # stored (in, out)
        params[f"b{li + 1}"] = jax.random.uniform(
            kb, (1, fan_out), jnp.float32, -bound, bound)
        if li < len(dims) - 2:                                   # BN after first two
            params[f"g{li + 1}"] = jnp.ones((1, fan_out), jnp.float32)
            params[f"beta{li + 1}"] = jnp.zeros((1, fan_out), jnp.float32)
    return params


def cast_heavy_inputs_bf16(x, params):
    """bf16 for the HBM-dominant operands (x, w1, w2); accumulation & the
    ReLU/BN epilogue stay f32 inside the kernels (v5e-safe).  Recommended as
    the default on v6e/v7x (mem-bound -> ~30-40% traffic cut on pass 1)."""
    p = dict(params)
    p["w1"] = params["w1"].astype(jnp.bfloat16)
    p["w2"] = params["w2"].astype(jnp.bfloat16)
    return x.astype(jnp.bfloat16), p


def oec_forward(x, params, *, mode="auto", tile=DEFAULT_TILE, precision=None,
                interm_dtype=jnp.bfloat16):
    """x: (batch, 192)  ->  (batch,) float32.

    mode: "resident" (whole batch in VMEM, exact single-kernel BN),
          "tiled" (pipelined 3-pass batch grid, exact BN via partial stats),
          or "auto" (dispatch on batch size; >2048 rows -> tiled so the
          batch-parallel grid pipelines DMAs and uses both v7x TensorCores).
    precision: default (None) uses the MXU's decomposed-f32 default and will
          not bit-match a HIGHEST-precision reference; pass
          lax.Precision.HIGHEST for f32 fidelity (mem-bound, so nearly free).
    interm_dtype: storage dtype for the a1 intermediate in the tiled path
          (bf16 default halves intermediate HBM traffic; stats stay f32).
    """
    B = x.shape[0]
    assert x.shape[1] == params["w1"].shape[0]
    p, _, _ = _pad_features(params)
    if mode == "auto":
        mode = "resident" if B <= MAX_RESIDENT_ROWS else "tiled"
    if mode == "resident":
        return _forward_resident(x, p, precision)
    t = int(tile)
    t = min(t, _round_up(B, _TILE_QUANTUM))
    t = max(_TILE_QUANTUM, _round_up(t, _TILE_QUANTUM))
    return _forward_tiled(x, p, precision, t, interm_dtype)
    # TODO(synk): use_residual=True branch (residual_layer on -||p-q||^2 mean)
    # not implemented; the default module config never executes it.


def oec_reference(x, params):
    """Pure-JAX reference (HIGHEST precision) for correctness checking."""
    prec = lax.Precision.HIGHEST

    def bn(h, g, be):
        mu = jnp.mean(h, axis=0, keepdims=True)
        d = h - mu
        var = jnp.mean(d * d, axis=0, keepdims=True)
        return d * lax.rsqrt(var + BN_EPS) * g + be

    x = x.astype(jnp.float32)
    h = jnp.maximum(jnp.dot(x, params["w1"].astype(jnp.float32), precision=prec)
                    + params["b1"], 0.0)
    h = bn(h, params["g1"], params["beta1"])
    h = jnp.maximum(jnp.dot(h, params["w2"].astype(jnp.float32), precision=prec)
                    + params["b2"], 0.0)
    h = bn(h, params["g2"], params["beta2"])
    z = jnp.dot(h, params["w3"].astype(jnp.float32), precision=prec) + params["b3"]
    return z[:, 0]


if __name__ == "__main__":
    import numpy as np

    key = jax.random.PRNGKey(0)
    k_params, k_x1, k_x2 = jax.random.split(key, 3)

    IN_DIM = 64 * 3            # 192, fixed by net=[64*3, 100, 100, 1]
    params = init_params(k_params)

    # Loose tolerance: accommodates MXU f32-decomposition precision defaults
    # while still catching any semantic error (those are O(1)).
    TOL = dict(atol=3e-2, rtol=3e-2)

    # 1) small batch, whole-batch-resident kernel (exact BN), f32
    x1 = jax.random.normal(k_x1, (8, IN_DIM), jnp.float32)
    z1 = oec_forward(x1, params, mode="resident")
    jax.block_until_ready(z1)
    assert z1.shape == (8,), z1.shape
    np.testing.assert_allclose(np.asarray(z1), np.asarray(oec_reference(x1, params)), **TOL)

    # 2) batch-tiled / pipelined 3-pass variant with f32 intermediates
    #    (exercises grid parallelism, feature padding, padded-row masking,
    #    BN folding and the cross-tile stat reduction)
    x2 = jax.random.normal(k_x2, (200, IN_DIM), jnp.float32)
    z2 = oec_forward(x2, params, mode="tiled", tile=128, interm_dtype=jnp.float32)
    jax.block_until_ready(z2)
    assert z2.shape == (200,), z2.shape
    np.testing.assert_allclose(np.asarray(z2), np.asarray(oec_reference(x2, params)), **TOL)

    # 3) tiled path with the default bf16 a1 intermediate (traffic-optimized)
    z3 = oec_forward(x2, params, mode="tiled", tile=128)
    jax.block_until_ready(z3)
    assert z3.shape == (200,), z3.shape
    np.testing.assert_allclose(np.asarray(z3), np.asarray(oec_reference(x2, params)),
                               atol=5e-2, rtol=5e-2)

    # 4) bf16 storage for x/w1/w2 with f32 accumulation (v6e/v7x mem-BW win)
    xb, pb = cast_heavy_inputs_bf16(x1, params)
    z4 = oec_forward(xb, pb, mode="resident")
    jax.block_until_ready(z4)
    assert z4.shape == (8,) and bool(jnp.all(jnp.isfinite(z4)))

    print("KERNEL_OK")
</pallas_src>

<mosaic_0001>
module attributes {stable_mosaic.version = 11 : i64} {
  func.func @_oec_resident_kernel(%arg0: memref<8x192xf32, #tpu.memory_space<vmem>>, %arg1: memref<192x128xf32, #tpu.memory_space<vmem>>, %arg2: memref<128x128xf32, #tpu.memory_space<vmem>>, %arg3: memref<8x128xf32, #tpu.memory_space<vmem>>, %arg4: memref<8x1xf32, #tpu.memory_space<vmem>>) attributes {dimension_semantics = [], scalar_prefetch = 0 : i64, scratch_operands = 0 : i64, tpu.core_type = #tpu.core_type<tc>} {
    %c0 = arith.constant 0 : index
    %c0_0 = arith.constant 0 : index
    %0 = vector.load %arg3[%c0, %c0_0] : memref<8x128xf32, #tpu.memory_space<vmem>>, vector<8x128xf32>
    %1 = vector.extract_strided_slice %0 {offsets = [0, 0], sizes = [1, 128], strides = [1, 1]} : vector<8x128xf32> to vector<1x128xf32>
    %2 = vector.extract_strided_slice %0 {offsets = [1, 0], sizes = [1, 128], strides = [1, 1]} : vector<8x128xf32> to vector<1x128xf32>
    %3 = vector.extract_strided_slice %0 {offsets = [2, 0], sizes = [1, 128], strides = [1, 1]} : vector<8x128xf32> to vector<1x128xf32>
    %4 = vector.extract_strided_slice %0 {offsets = [3, 0], sizes = [1, 128], strides = [1, 1]} : vector<8x128xf32> to vector<1x128xf32>
    %5 = vector.extract_strided_slice %0 {offsets = [4, 0], sizes = [1, 128], strides = [1, 1]} : vector<8x128xf32> to vector<1x128xf32>
    %6 = vector.extract_strided_slice %0 {offsets = [5, 0], sizes = [1, 128], strides = [1, 1]} : vector<8x128xf32> to vector<1x128xf32>
    %7 = vector.extract_strided_slice %0 {offsets = [6, 0], sizes = [1, 128], strides = [1, 1]} : vector<8x128xf32> to vector<1x128xf32>
    %8 = vector.extract_strided_slice %0 {offsets = [7, 0], sizes = [1, 1], strides = [1, 1]} : vector<8x128xf32> to vector<1x1xf32>
    %c0_1 = arith.constant 0 : index
    %c0_2 = arith.constant 0 : index
    %9 = vector.load %arg0[%c0_1, %c0_2] : memref<8x192xf32, #tpu.memory_space<vmem>>, vector<8x192xf32>
    %c0_3 = arith.constant 0 : index
    %c0_4 = arith.constant 0 : index
    %10 = vector.load %arg1[%c0_3, %c0_4] : memref<192x128xf32, #tpu.memory_space<vmem>>, vector<192x128xf32>
    %cst = arith.constant dense<0.000000e+00> : vector<8x128xf32>
    %11 = tpu.matmul %9, %10, %cst {dimension_numbers = #tpu.dot_dimension_numbers<[1], [0], [0], [1], [0, 0, 1, 1], [], []>} : vector<8x192xf32>, vector<192x128xf32>, vector<8x128xf32> -> vector<8x128xf32>
    %12 = vector.broadcast %1 : vector<1x128xf32> to vector<8x128xf32>
    %13 = arith.addf %11, %12 : vector<8x128xf32>
    %cst_5 = arith.constant 0.000000e+00 : f32
    %14 = vector.broadcast %cst_5 : f32 to vector<8x128xf32>
    %15 = arith.maximumf %13, %14 : vector<8x128xf32>
    %cst_6 = arith.constant dense<0.000000e+00> : vector<128xf32>
    %16 = vector.multi_reduction <add>, %15, %cst_6 [0] : vector<8x128xf32> to vector<128xf32>
    %17 = vector.shape_cast %16 : vector<128xf32> to vector<1x128xf32>
    %cst_7 = arith.constant 8.000000e+00 : f32
    %18 = vector.broadcast %cst_7 : f32 to vector<1x128xf32>
    %19 = arith.divf %17, %18 : vector<1x128xf32>
    %20 = vector.broadcast %19 : vector<1x128xf32> to vector<8x128xf32>
    %21 = arith.subf %15, %20 : vector<8x128xf32>
    %22 = arith.mulf %21, %21 : vector<8x128xf32>
    %cst_8 = arith.constant dense<0.000000e+00> : vector<128xf32>
    %23 = vector.multi_reduction <add>, %22, %cst_8 [0] : vector<8x128xf32> to vector<128xf32>
    %24 = vector.shape_cast %23 : vector<128xf32> to vector<1x128xf32>
    %cst_9 = arith.constant 8.000000e+00 : f32
    %25 = vector.broadcast %cst_9 : f32 to vector<1x128xf32>
    %26 = arith.divf %24, %25 : vector<1x128xf32>
    %cst_10 = arith.constant 9.99999974E-6 : f32
    %27 = vector.broadcast %cst_10 : f32 to vector<1x128xf32>
    %28 = arith.addf %26, %27 : vector<1x128xf32>
    %29 = math.rsqrt %28 : vector<1x128xf32>
    %30 = arith.mulf %2, %29 : vector<1x128xf32>
    %31 = vector.broadcast %30 : vector<1x128xf32> to vector<8x128xf32>
    %32 = arith.mulf %21, %31 : vector<8x128xf32>
    %33 = vector.broadcast %3 : vector<1x128xf32> to vector<8x128xf32>
    %34 = arith.addf %32, %33 : vector<8x128xf32>
    %c0_11 = arith.constant 0 : index
    %c0_12 = arith.constant 0 : index
    %35 = vector.load %arg2[%c0_11, %c0_12] : memref<128x128xf32, #tpu.memory_space<vmem>>, vector<128x128xf32>
    %cst_13 = arith.constant dense<0.000000e+00> : vector<8x128xf32>
    %36 = tpu.matmul %34, %35, %cst_13 {dimension_numbers = #tpu.dot_dimension_numbers<[1], [0], [0], [1], [0, 0, 1, 1], [], []>} : vector<8x128xf32>, vector<128x128xf32>, vector<8x128xf32> -> vector<8x128xf32>
    %37 = vector.broadcast %4 : vector<1x128xf32> to vector<8x128xf32>
    %38 = arith.addf %36, %37 : vector<8x128xf32>
    %cst_14 = arith.constant 0.000000e+00 : f32
    %39 = vector.broadcast %cst_14 : f32 to vector<8x128xf32>
    %40 = arith.maximumf %38, %39 : vector<8x128xf32>
    %cst_15 = arith.constant dense<0.000000e+00> : vector<128xf32>
    %41 = vector.multi_reduction <add>, %40, %cst_15 [0] : vector<8x128xf32> to vector<128xf32>
    %42 = vector.shape_cast %41 : vector<128xf32> to vector<1x128xf32>
    %cst_16 = arith.constant 8.000000e+00 : f32
    %43 = vector.broadcast %cst_16 : f32 to vector<1x128xf32>
    %44 = arith.divf %42, %43 : vector<1x128xf32>
    %45 = vector.broadcast %44 : vector<1x128xf32> to vector<8x128xf32>
    %46 = arith.subf %40, %45 : vector<8x128xf32>
    %47 = arith.mulf %46, %46 : vector<8x128xf32>
    %cst_17 = arith.constant dense<0.000000e+00> : vector<128xf32>
    %48 = vector.multi_reduction <add>, %47, %cst_17 [0] : vector<8x128xf32> to vector<128xf32>
    %49 = vector.shape_cast %48 : vector<128xf32> to vector<1x128xf32>
    %cst_18 = arith.constant 8.000000e+00 : f32
    %50 = vector.broadcast %cst_18 : f32 to vector<1x128xf32>
    %51 = arith.divf %49, %50 : vector<1x128xf32>
    %cst_19 = arith.constant 9.99999974E-6 : f32
    %52 = vector.broadcast %cst_19 : f32 to vector<1x128xf32>
    %53 = arith.addf %51, %52 : vector<1x128xf32>
    %54 = math.rsqrt %53 : vector<1x128xf32>
    %55 = arith.mulf %5, %54 : vector<1x128xf32>
    %56 = vector.broadcast %55 : vector<1x128xf32> to vector<8x128xf32>
    %57 = arith.mulf %46, %56 : vector<8x128xf32>
    %58 = vector.broadcast %6 : vector<1x128xf32> to vector<8x128xf32>
    %59 = arith.addf %57, %58 : vector<8x128xf32>
    %60 = vector.broadcast %7 : vector<1x128xf32> to vector<8x128xf32>
    %61 = arith.mulf %59, %60 : vector<8x128xf32>
    %cst_20 = arith.constant dense<0.000000e+00> : vector<8xf32>
    %62 = vector.multi_reduction <add>, %61, %cst_20 [1] : vector<8x128xf32> to vector<8xf32>
    %63 = vector.shape_cast %62 : vector<8xf32> to vector<8x1xf32>
    %64 = vector.broadcast %8 : vector<1x1xf32> to vector<8x1xf32>
    %65 = arith.addf %63, %64 : vector<8x1xf32>
    %c0_21 = arith.constant 0 : index
    %c0_22 = arith.constant 0 : index
    %66 = vector.load %arg4[%c0_21, %c0_22] : memref<8x1xf32, #tpu.memory_space<vmem>>, vector<8x1xf32>
    tpu.vector_store %arg4[%c0_21, %c0_22], %65 {strides = array<i32>} : memref<8x1xf32, #tpu.memory_space<vmem>>, vector<8x1xf32>,
    return
  }
}

</mosaic_0001>

<llo_original>
// kernel: tpu_custom_call.1
$region0: #{tpu_custom_call.1}
  #allocation0 [shape = 'u32[]', space=smem, size = 0x4, offset = 0x4, fixed_abs, tag = 'smem constant byte address 0x4 - core index']
  #allocation1 [shape = 'u32[144,128]{1,0:T(1,128)}', space=vmem, size = 0x12000, scoped, tag = 'internal scratch']
  %s0 = inlined_call_operand.hbm [shape: f32[8,192], index: 0, kind: input, shape index: {}]
  %s1 = inlined_call_operand.hbm [shape: f32[192,128], index: 1, kind: input, shape index: {}]
  %s2 = inlined_call_operand.hbm [shape: f32[128,128], index: 2, kind: input, shape index: {}]
  %s3 = inlined_call_operand.hbm [shape: f32[8,128], index: 3, kind: input, shape index: {}]
  %s4 = inlined_call_operand.vmem [shape: f32[8,1], index: 4, kind: output, shape index: {}]
  %s5 = sld [smem:[#allocation0]]
  $region42: #{tpu_custom_call.1} parent=0
    _
  %s7 = ssub.s32 1, %s5
  %s8 = scalar_select 0, %s7, %s5
  $region1: #{tpu_custom_call.1} parent=0
    #allocation2 [shape = 'u8[8192]{0}', space=vmem, size = 0x2000, scoped, tag = 'input window, operand 0, single buffered']
    #allocation3 [shape = 's32[1]{0}', space=sflag, size = 0x4, scoped, tag = 'scoped memory for tpu_custom_call.1']
    #allocation4 [shape = 'u8[98304]{0}', space=vmem, size = 0x18000, scoped, tag = 'input window, operand 1, single buffered']
    #allocation5 [shape = 's32[1]{0}', space=sflag, size = 0x4, scoped, tag = 'scoped memory for tpu_custom_call.1']
    #allocation6 [shape = 'u8[65536]{0}', space=vmem, size = 0x10000, scoped, tag = 'input window, operand 2, single buffered']
    #allocation7 [shape = 'u8[4096]{0}', space=vmem, size = 0x1000, scoped, tag = 'input window, operand 3, single buffered']
    #allocation8 [shape = 's32[1]{0}', space=sflag, size = 0x4, scoped, tag = 'scoped memory for tpu_custom_call.1']
    %9 = vsyncpa [#allocation3], 0
    %10 = vsyncpa [#allocation5], 0
    %11 = vsyncpa [#allocation8], 0
    // Predicated region
    $region2: #{tpu_custom_call.1} parent=1 // pred_check
      _
    $region3: #{tpu_custom_call.1} parent=1 // pred_check_branch
      %13 = sbr.rel (0) target = $region5
    $region4: #{tpu_custom_call.1} parent=1 // pred_region
      %s15 = ssub.s32 256, 256
      %16 = vsyncadd [#allocation3], %s15
      %s18 = sshll.u32 [#allocation2], 4
      %s19 = int_to_ptr.vmem [resolvable:$true] %s18
      %21 = dma.hbm_to_vmem [thread:$0]  %s0, 256, %s19, [#allocation3]
    $region5: #{tpu_custom_call.1} parent=1 // pred_fallthru
      _
    // Predicated region
    $region6: #{tpu_custom_call.1} parent=1 // pred_check
      _
    $region7: #{tpu_custom_call.1} parent=1 // pred_check_branch
      %23 = sbr.rel (0) target = $region9
    $region8: #{tpu_custom_call.1} parent=1 // pred_region
      %s25 = ssub.s32 3072, 3072
      %26 = vsyncadd [#allocation5], %s25
      %s27 = sshll.u32 [#allocation4], 4
      %s28 = int_to_ptr.vmem [resolvable:$true] %s27
      %33 = dma.hbm_to_vmem [thread:$0]  %s1, 3072, %s28, [#allocation5], 128, 128, 8
    $region9: #{tpu_custom_call.1} parent=1 // pred_fallthru
      _
    // Predicated region
    $region10: #{tpu_custom_call.1} parent=1 // pred_check
      _
    $region11: #{tpu_custom_call.1} parent=1 // pred_check_branch
      %35 = sbr.rel (0) target = $region13
    $region12: #{tpu_custom_call.1} parent=1 // pred_region
      %s37 = ssub.s32 2048, 2048
      %38 = vsyncadd [#allocation5], %s37
      %s39 = sshll.u32 [#allocation6], 4
      %s40 = int_to_ptr.vmem [resolvable:$true] %s39
      %45 = dma.hbm_to_vmem [thread:$0]  %s2, 2048, %s40, [#allocation5], 128, 128, 8
    $region13: #{tpu_custom_call.1} parent=1 // pred_fallthru
      _
    // Predicated region
    $region14: #{tpu_custom_call.1} parent=1 // pred_check
      _
    $region15: #{tpu_custom_call.1} parent=1 // pred_check_branch
      %47 = sbr.rel (0) target = $region17
    $region16: #{tpu_custom_call.1} parent=1 // pred_region
      %s49 = ssub.s32 128, 128
      %50 = vsyncadd [#allocation8], %s49
      %s52 = sshll.u32 [#allocation7], 4
      %s53 = int_to_ptr.vmem [resolvable:$true] %s52
      %55 = dma.hbm_to_vmem [thread:$0]  %s3, 128, %s53, [#allocation8]
    $region17: #{tpu_custom_call.1} parent=1 // pred_fallthru
      _
    // Predicated region
    $region18: #{tpu_custom_call.1} parent=1 // pred_check
      _
    $region19: #{tpu_custom_call.1} parent=1 // pred_check_branch
      %57 = sbr.rel (0) target = $region21
    $region20: #{tpu_custom_call.1} parent=1 // pred_region
      %58 = dma.done [#allocation3], 256
    $region21: #{tpu_custom_call.1} parent=1 // pred_fallthru
      _
    // Predicated region
    $region22: #{tpu_custom_call.1} parent=1 // pred_check
      _
    $region23: #{tpu_custom_call.1} parent=1 // pred_check_branch
      %60 = sbr.rel (0) target = $region25
    $region24: #{tpu_custom_call.1} parent=1 // pred_region
      %61 = dma.done [#allocation5], 3072
    $region25: #{tpu_custom_call.1} parent=1 // pred_fallthru
      _
    // Predicated region
    $region26: #{tpu_custom_call.1} parent=1 // pred_check
      _
    $region27: #{tpu_custom_call.1} parent=1 // pred_check_branch
      %63 = sbr.rel (0) target = $region29
    $region28: #{tpu_custom_call.1} parent=1 // pred_region
      %64 = dma.done [#allocation5], 2048
    $region29: #{tpu_custom_call.1} parent=1 // pred_fallthru
      _
    // Predicated region
    $region30: #{tpu_custom_call.1} parent=1 // pred_check
      _
    $region31: #{tpu_custom_call.1} parent=1 // pred_check_branch
      %66 = sbr.rel (0) target = $region33
    $region32: #{tpu_custom_call.1} parent=1 // pred_region
      %67 = dma.done [#allocation8], 128
    $region33: #{tpu_custom_call.1} parent=1 // pred_fallthru
      _
    %v68 = vld [vmem:[#allocation7] sm:$0xff]
    %v69 = vld [vmem:[#allocation2] sm:$0xff]
    %v70 = vld [vmem:[#allocation2 + $0x8] sm:$0xff]
    %v71 = vld [vmem:[#allocation4] sm:$0xff]
    %v72 = vld [vmem:[#allocation4 + $0x8] sm:$0xff]
    %v73 = vld [vmem:[#allocation4 + $0x10] sm:$0xff]
    %v74 = vld [vmem:[#allocation4 + $0x18] sm:$0xff]
    %v75 = vld [vmem:[#allocation4 + $0x20] sm:$0xff]
    %v76 = vld [vmem:[#allocation4 + $0x28] sm:$0xff]
    %v77 = vld [vmem:[#allocation4 + $0x30] sm:$0xff]
    %v78 = vld [vmem:[#allocation4 + $0x38] sm:$0xff]
    %v79 = vld [vmem:[#allocation4 + $0x40] sm:$0xff]
    %v80 = vld [vmem:[#allocation4 + $0x48] sm:$0xff]
    %v81 = vld [vmem:[#allocation4 + $0x50] sm:$0xff]
    %v82 = vld [vmem:[#allocation4 + $0x58] sm:$0xff]
    %v83 = vld [vmem:[#allocation4 + $0x60] sm:$0xff]
    %v84 = vld [vmem:[#allocation4 + $0x68] sm:$0xff]
    %v85 = vld [vmem:[#allocation4 + $0x70] sm:$0xff]
    %v86 = vld [vmem:[#allocation4 + $0x78] sm:$0xff]
    %v87 = vld [vmem:[#allocation4 + $0x80] sm:$0xff]
    %v88 = vld [vmem:[#allocation4 + $0x88] sm:$0xff]
    %v89 = vld [vmem:[#allocation4 + $0x90] sm:$0xff]
    %v90 = vld [vmem:[#allocation4 + $0x98] sm:$0xff]
    %v91 = vld [vmem:[#allocation4 + $0xa0] sm:$0xff]
    %v92 = vld [vmem:[#allocation4 + $0xa8] sm:$0xff]
    %v93 = vld [vmem:[#allocation4 + $0xb0] sm:$0xff]
    %v94 = vld [vmem:[#allocation4 + $0xb8] sm:$0xff]
    %v95 = vlaneseq
    %v96 = vshrl.u32 %v95, 7
    %v97 = vsub.s32 0, %v96
    %v98 = vrot.slane %v68, %v97
    %vm99 = vcmask 523264
    %v101 = vsel %vm99, %v70, 0
    %103 = vmatprep.subr.mxu0 0.0
    %104 = vmatpush1.msra.mxu0 %v86
    %105 = vmatprep.subr.mxu0 0.0
    %106 = vmatpush1.msra.mxu0 %v85
    %107 = vmatprep.subr.mxu0 0.0
    %108 = vmatpush1.msra.mxu0 %v84
    %109 = vmatprep.subr.mxu0 0.0
    %110 = vmatpush1.msra.mxu0 %v83
    %111 = vmatprep.subr.mxu0 0.0
    %112 = vmatpush1.msra.mxu0 %v82
    %113 = vmatprep.subr.mxu0 0.0
    %114 = vmatpush1.msra.mxu0 %v81
    %115 = vmatprep.subr.mxu0 0.0
    %116 = vmatpush1.msra.mxu0 %v80
    %117 = vmatprep.subr.mxu0 0.0
    %118 = vmatpush1.msra.mxu0 %v79
    %119 = vmatprep.subr.mxu0 0.0
    %120 = vmatpush1.msra.mxu0 %v78
    %121 = vmatprep.subr.mxu0 0.0
    %122 = vmatpush1.msra.mxu0 %v77
    %123 = vmatprep.subr.mxu0 0.0
    %124 = vmatpush1.msra.mxu0 %v76
    %125 = vmatprep.subr.mxu0 0.0
    %126 = vmatpush1.msra.mxu0 %v75
    %127 = vmatprep.subr.mxu0 0.0
    %128 = vmatpush1.msra.mxu0 %v74
    %129 = vmatprep.subr.mxu0 0.0
    %130 = vmatpush1.msra.mxu0 %v73
    %131 = vmatprep.subr.mxu0 0.0
    %132 = vmatpush1.msra.mxu0 %v72
    %133 = vmatprep.subr.mxu0 0.0
    %134 = vmatpush1.msra.mxu0 %v71
    %135 = vmatprep.subr.mxu0 0.0
    %136 = vmatpush2.msra.mxu0 0.0
    %137 = vmatprep.subr.mxu0 0.0
    %138 = vmatpush2.msra.mxu0 0.0
    %139 = vmatprep.subr.mxu0 0.0
    %140 = vmatpush2.msra.mxu0 0.0
    %141 = vmatprep.subr.mxu0 0.0
    %142 = vmatpush2.msra.mxu0 0.0
    %143 = vmatprep.subr.mxu0 0.0
    %144 = vmatpush2.msra.mxu0 0.0
    %145 = vmatprep.subr.mxu0 0.0
    %146 = vmatpush2.msra.mxu0 0.0
    %147 = vmatprep.subr.mxu0 0.0
    %148 = vmatpush2.msra.mxu0 0.0
    %149 = vmatprep.subr.mxu0 0.0
    %150 = vmatpush2.msra.mxu0 0.0
    %151 = vmatprep.subr.mxu0 0.0
    %152 = vmatpush2.msra.mxu0 %v94
    %153 = vmatprep.subr.mxu0 0.0
    %154 = vmatpush2.msra.mxu0 %v93
    %155 = vmatprep.subr.mxu0 0.0
    %156 = vmatpush2.msra.mxu0 %v92
    %157 = vmatprep.subr.mxu0 0.0
    %158 = vmatpush2.msra.mxu0 %v91
    %159 = vmatprep.subr.mxu0 0.0
    %160 = vmatpush2.msra.mxu0 %v90
    %161 = vmatprep.subr.mxu0 0.0
    %162 = vmatpush2.msra.mxu0 %v89
    %163 = vmatprep.subr.mxu0 0.0
    %164 = vmatpush2.msra.mxu0 %v88
    %165 = vmatprep.subr.mxu0 0.0
    %166 = vmatpush2.msra.mxu0 %v87
    %167 = vmatprep.mubr.f32.mxu0 %v101
    %168 = vmatmul.mubr.f32.gmra.mxu0 %v69
    %v169 = vpop.f32.mrf.mxu0
    %v170 = vadd.f32 %v98, %v169
    %v171 = vpop.f32.mrf.mxu0
    %172 = vdwg.mxu0
    %v173 = vmax.f32 %v170, 0.0
    %v174 = vrot.slane %v173, 4
    %v175 = vadd.f32 %v173, %v174
    %v176 = vrot.slane %v175, 2
    %v177 = vadd.f32 %v175, %v176
    %v178 = vrot.slane %v177, 1
    %v179 = vadd.f32 %v177, %v178
    %v180 = vrcp.pop 8.0
    %v181 = vmul.f32 %v179, %v180
    %v182 = vsub.f32 %v173, %v181
    %v183 = vmul.f32 %v182, %v182
    %v184 = vrot.slane %v183, 4
    %v185 = vadd.f32 %v183, %v184
    %v186 = vrot.slane %v185, 2
    %v187 = vadd.f32 %v185, %v186
    %v188 = vrot.slane %v187, 1
    %v189 = vadd.f32 %v187, %v188
    %v190 = vmul.f32 %v189, %v180
    %v191 = vadd.f32 %v190, 1e-05
    %v192 = vrsqrt.pop %v191
    %v193 = vmul.f32 %v68, %v192
    %v194 = vlaneseq
    %v195 = vshrl.u32 %v194, 7
    %v196 = vsub.s32 1, %v195
    %v197 = vrot.slane %v193, %v196
    %v198 = vmul.f32 %v182, %v197
    %v199 = vlaneseq
    %v200 = vshrl.u32 %v199, 7
    %v201 = vsub.s32 2, %v200
    %v202 = vrot.slane %v68, %v201
    %v203 = vadd.f32 %v198, %v202
    %v204 = vld [vmem:[#allocation6] sm:$0xff]
    %v205 = vld [vmem:[#allocation6 + $0x8] sm:$0xff]
    %v206 = vld [vmem:[#allocation6 + $0x10] sm:$0xff]
    %v207 = vld [vmem:[#allocation6 + $0x18] sm:$0xff]
    %v208 = vld [vmem:[#allocation6 + $0x20] sm:$0xff]
    %v209 = vld [vmem:[#allocation6 + $0x28] sm:$0xff]
    %v210 = vld [vmem:[#allocation6 + $0x30] sm:$0xff]
    %v211 = vld [vmem:[#allocation6 + $0x38] sm:$0xff]
    %v212 = vld [vmem:[#allocation6 + $0x40] sm:$0xff]
    %v213 = vld [vmem:[#allocation6 + $0x48] sm:$0xff]
    %v214 = vld [vmem:[#allocation6 + $0x50] sm:$0xff]
    %v215 = vld [vmem:[#allocation6 + $0x58] sm:$0xff]
    %v216 = vld [vmem:[#allocation6 + $0x60] sm:$0xff]
    %v217 = vld [vmem:[#allocation6 + $0x68] sm:$0xff]
    %v218 = vld [vmem:[#allocation6 + $0x70] sm:$0xff]
    %v219 = vld [vmem:[#allocation6 + $0x78] sm:$0xff]
    %v220 = vlaneseq
    %v221 = vshrl.u32 %v220, 7
    %v222 = vsub.s32 3, %v221
    %v223 = vrot.slane %v68, %v222
    %224 = vmatprep.subr.mxu0 0.0
    %225 = vmatpush1.msra.mxu0 %v219
    %226 = vmatprep.subr.mxu0 0.0
    %227 = vmatpush1.msra.mxu0 %v218
    %228 = vmatprep.subr.mxu0 0.0
    %229 = vmatpush1.msra.mxu0 %v217
    %230 = vmatprep.subr.mxu0 0.0
    %231 = vmatpush1.msra.mxu0 %v216
    %232 = vmatprep.subr.mxu0 0.0
    %233 = vmatpush1.msra.mxu0 %v215
    %234 = vmatprep.subr.mxu0 0.0
    %235 = vmatpush1.msra.mxu0 %v214
    %236 = vmatprep.subr.mxu0 0.0
    %237 = vmatpush1.msra.mxu0 %v213
    %238 = vmatprep.subr.mxu0 0.0
    %239 = vmatpush1.msra.mxu0 %v212
    %240 = vmatprep.subr.mxu0 0.0
    %241 = vmatpush1.msra.mxu0 %v211
    %242 = vmatprep.subr.mxu0 0.0
    %243 = vmatpush1.msra.mxu0 %v210
    %244 = vmatprep.subr.mxu0 0.0
    %245 = vmatpush1.msra.mxu0 %v209
    %246 = vmatprep.subr.mxu0 0.0
    %247 = vmatpush1.msra.mxu0 %v208
    %248 = vmatprep.subr.mxu0 0.0
    %249 = vmatpush1.msra.mxu0 %v207
    %250 = vmatprep.subr.mxu0 0.0
    %251 = vmatpush1.msra.mxu0 %v206
    %252 = vmatprep.subr.mxu0 0.0
    %253 = vmatpush1.msra.mxu0 %v205
    %254 = vmatprep.subr.mxu0 0.0
    %255 = vmatpush1.msra.mxu0 %v204
    %256 = vmatprep.subr.mxu0 0.0
    %257 = vmatpush2.msra.mxu0 0.0
    %258 = vmatprep.subr.mxu0 0.0
    %259 = vmatpush2.msra.mxu0 0.0
    %260 = vmatprep.subr.mxu0 0.0
    %261 = vmatpush2.msra.mxu0 0.0
    %262 = vmatprep.subr.mxu0 0.0
    %263 = vmatpush2.msra.mxu0 0.0
    %264 = vmatprep.subr.mxu0 0.0
    %265 = vmatpush2.msra.mxu0 0.0
    %266 = vmatprep.subr.mxu0 0.0
    %267 = vmatpush2.msra.mxu0 0.0
    %268 = vmatprep.subr.mxu0 0.0
    %269 = vmatpush2.msra.mxu0 0.0
    %270 = vmatprep.subr.mxu0 0.0
    %271 = vmatpush2.msra.mxu0 0.0
    %272 = vmatprep.subr.mxu0 0.0
    %273 = vmatpush2.msra.mxu0 0.0
    %274 = vmatprep.subr.mxu0 0.0
    %275 = vmatpush2.msra.mxu0 0.0
    %276 = vmatprep.subr.mxu0 0.0
    %277 = vmatpush2.msra.mxu0 0.0
    %278 = vmatprep.subr.mxu0 0.0
    %279 = vmatpush2.msra.mxu0 0.0
    %280 = vmatprep.subr.mxu0 0.0
    %281 = vmatpush2.msra.mxu0 0.0
    %282 = vmatprep.subr.mxu0 0.0
    %283 = vmatpush2.msra.mxu0 0.0
    %284 = vmatprep.subr.mxu0 0.0
    %285 = vmatpush2.msra.mxu0 0.0
    %286 = vmatprep.subr.mxu0 0.0
    %287 = vmatpush2.msra.mxu0 0.0
    %288 = vmatprep.mubr.f32.mxu0 0.0
    %289 = vmatmul.mubr.f32.gmra.mxu0 %v203
    %v290 = vpop.f32.mrf.mxu0
    %v291 = vadd.f32 %v223, %v290
    %v292 = vpop.f32.mrf.mxu0
    %293 = vdwg.mxu0
    %v294 = vmax.f32 %v291, 0.0
    %v295 = vrot.slane %v294, 4
    %v296 = vadd.f32 %v294, %v295
    %v297 = vrot.slane %v296, 2
    %v298 = vadd.f32 %v296, %v297
    %v299 = vrot.slane %v298, 1
    %v300 = vadd.f32 %v298, %v299
    %v301 = vmul.f32 %v300, %v180
    %v302 = vsub.f32 %v294, %v301
    %v303 = vmul.f32 %v302, %v302
    %v304 = vrot.slane %v303, 4
    %v305 = vadd.f32 %v303, %v304
    %v306 = vrot.slane %v305, 2
    %v307 = vadd.f32 %v305, %v306
    %v308 = vrot.slane %v307, 1
    %v309 = vadd.f32 %v307, %v308
    %v310 = vmul.f32 %v309, %v180
    %v311 = vadd.f32 %v310, 1e-05
    %v312 = vrsqrt.pop %v311
    %v313 = vmul.f32 %v68, %v312
    %v314 = vlaneseq
    %v315 = vshrl.u32 %v314, 7
    %v316 = vsub.s32 4, %v315
    %v317 = vrot.slane %v313, %v316
    %v318 = vmul.f32 %v302, %v317
    %v319 = vlaneseq
    %v320 = vshrl.u32 %v319, 7
    %v321 = vsub.s32 5, %v320
    %v322 = vrot.slane %v68, %v321
    %v323 = vadd.f32 %v318, %v322
    %v324 = vlaneseq
    %v325 = vshrl.u32 %v324, 7
    %v326 = vsub.s32 6, %v325
    %v327 = vrot.slane %v68, %v326
    %v328 = vmul.f32 %v323, %v327
    %329 = vadd.xlane.f32.xlu0 %v328
    %v330 = vpop.xlane.xlu0 %329
    %v331 = vlaneseq
    %v332 = vshrl.u32 %v331, 7
    %v333 = vsub.s32 7, %v332
    %v334 = vrot.slane %v68, %v333
    %v335 = vadd.f32 %v330, %v334
    %vm336 = vcmask 7168
    %337 = vst.msk [vmem:[%s4] sm:$0xff] %vm336, %v335
    // Predicated region
    $region34: #{tpu_custom_call.1} parent=1 // pred_check
      _
    $region35: #{tpu_custom_call.1} parent=1 // pred_check_branch
      %339 = sbr.rel (0) target = $region37
    $region36: #{tpu_custom_call.1} parent=1 // pred_region
      _
    $region37: #{tpu_custom_call.1} parent=1 // pred_fallthru
      _
    // Predicated region
    $region38: #{tpu_custom_call.1} parent=1 // pred_check
      _
    $region39: #{tpu_custom_call.1} parent=1 // pred_check_branch
      %341 = sbr.rel (0) target = $region41
    $region40: #{tpu_custom_call.1} parent=1 // pred_region
      _
    $region41: #{tpu_custom_call.1} parent=1 // pred_fallthru
      _
    %342 = vsyncpa [#allocation3], 1
    %343 = vsyncpa [#allocation5], 1
    %344 = vsyncpa [#allocation8], 1

</llo_original>
